<compile_context>
chip_gen: v5e
topology: v5e:2x2
jax: 0.10.0
libtpu: 0.0.40
codegen_flags: <defaults>
</compile_context>

<pallas_src>
import functools

import jax
import jax.numpy as jnp
from jax.experimental import pallas as pl
from jax.experimental.pallas import tpu as pltpu


def _round_up(x, m):
    return ((x + m - 1) // m) * m


# ----------------------------------------------------------------------------
# Host-side glue (straight port of the reference helper, pure Python).
# ----------------------------------------------------------------------------
def token_lens_to_idxs(token_lens):
    max_token_num = max([len(x) for x in token_lens])
    max_token_len = max([max(x) for x in token_lens])
    idxs, masks = [], []
    seq_id_pad = 0
    for seq_token_lens in token_lens:
        seq_idxs, seq_masks = [], []
        offset = 0
        for token_len in seq_token_lens:
            seq_idxs.extend([i + offset for i in range(token_len)]
                            + [seq_id_pad] * (max_token_len - token_len))
            seq_masks.extend([1.0 / token_len] * token_len
                             + [0.0] * (max_token_len - token_len))
            offset += token_len
        seq_idxs.extend([seq_id_pad] * max_token_len * (max_token_num - len(seq_token_lens)))
        seq_masks.extend([0.0] * max_token_len * (max_token_num - len(seq_token_lens)))
        idxs.append(seq_idxs)
        masks.append(seq_masks)
    return idxs, masks, max_token_num, max_token_len


# ----------------------------------------------------------------------------
# Kernel 1: sum across document chunks (encode_a_doc, 'average' pooling).
#   pooled[n, d] = sum_c chunks[c, n, d]
# (the token_ratio row scaling is folded into the gather masks on the host.)
# ----------------------------------------------------------------------------
def _chunk_sum_kernel(chunks_ref, out_ref):
    c = pl.program_id(1)

    @pl.when(c == 0)
    def _():
        out_ref[...] = jnp.zeros_like(out_ref)

    out_ref[...] += chunks_ref[0].astype(jnp.float32)


def chunk_sum(before_pooling, *, tile_n=512):
    C, N, D = before_pooling.shape
    n_pad8 = _round_up(N, 8)
    tn = min(tile_n, n_pad8)
    n_pad = _round_up(N, tn)
    if n_pad != N:
        before_pooling = jnp.pad(before_pooling, ((0, 0), (0, n_pad - N), (0, 0)))
    return pl.pallas_call(
        _chunk_sum_kernel,
        out_shape=jax.ShapeDtypeStruct((n_pad, D), jnp.float32),
        grid=(n_pad // tn, C),                       # reduction (chunk) axis last
        in_specs=[pl.BlockSpec((1, tn, D), lambda n, c: (c, n, 0))],
        out_specs=pl.BlockSpec((tn, D), lambda n, c: (n, 0)),
        compiler_params=pltpu.CompilerParams(
            dimension_semantics=("parallel", "arbitrary")),
    )(before_pooling)


# ----------------------------------------------------------------------------
# Kernel 2 (fused): wordpiece gather + mask-weighted sum per token + dropout.
# Token axis is blocked (>=8 tokens per grid step); the piece axis is a static
# in-kernel loop.  The pooled [N_pad, D] array is resident in VMEM (constant
# index map); rows are fetched with dynamic VMEM slices driven by the SMEM
# scalar-prefetch index table.  Emits both seq_out and seq_out_dropped.
# ----------------------------------------------------------------------------
def _gather_dropout_kernel(idx_ref, mask_ref, pooled_ref, u_ref,
                           out_ref, drop_ref, *,
                           tokens_per_tile, token_len, rate, apply_dropout):
    tile = pl.program_id(0)
    base = tile * (tokens_per_tile * token_len)
    inv_keep = 1.0 / (1.0 - rate) if apply_dropout else 1.0

    def body(i, carry):
        flat = base + i * token_len
        acc = jnp.zeros((1, out_ref.shape[1]), jnp.float32)
        # static (unrolled) piece loop -- max_token_len is small
        for p in range(token_len):
            row = idx_ref[flat + p]          # SMEM scalar read
            w = mask_ref[flat + p]           # SMEM scalar read (mask * token_ratio)
            acc = acc + pooled_ref[pl.ds(row, 1), :] * w
        out_ref[pl.ds(i, 1), :] = acc.astype(out_ref.dtype)
        if apply_dropout:
            keep = u_ref[pl.ds(i, 1), :] >= rate
            dropped = jnp.where(keep, acc * inv_keep, 0.0)
        else:
            dropped = acc
        drop_ref[pl.ds(i, 1), :] = dropped.astype(drop_ref.dtype)
        return carry

    jax.lax.fori_loop(0, tokens_per_tile, body, 0)


def fused_gather_dropout(pooled, idxs_flat, masks_flat, uniforms,
                         token_num_pad, token_len, *, rate, apply_dropout, tile_t):
    n_pad, D = pooled.shape
    tt = tile_t
    kernel = functools.partial(
        _gather_dropout_kernel,
        tokens_per_tile=tt, token_len=token_len,
        rate=float(rate), apply_dropout=bool(apply_dropout))

    grid_spec = pltpu.PrefetchScalarGridSpec(
        num_scalar_prefetch=2,               # (idxs, masks) land in SMEM
        grid=(token_num_pad // tt,),
        in_specs=[
            # pooled stays resident in VMEM: constant block index across the grid
            pl.BlockSpec((n_pad, D), lambda t, idx, msk: (0, 0)),
            pl.BlockSpec((tt, D), lambda t, idx, msk: (t, 0)),
        ],
        out_specs=[
            pl.BlockSpec((tt, D), lambda t, idx, msk: (t, 0)),
            pl.BlockSpec((tt, D), lambda t, idx, msk: (t, 0)),
        ],
    )

    # VMEM budget: resident pooled (x2 pipeline buffers) + double-buffered
    # uniform tile + two double-buffered output tiles; only raise the scoped
    # limit above the 32 MiB default when actually needed.
    itemsize = 4
    need = 2 * n_pad * D * itemsize + 6 * tt * D * itemsize + (4 << 20)
    cp = dict(dimension_semantics=("parallel",))
    if need > (32 << 20):
        # TODO(synk): for very long documents on v7x (64 MiB VMEM) fall back to a
        # manually double-buffered gather DMA instead of keeping pooled resident.
        cp["vmem_limit_bytes"] = int(min(need, 64 << 20))

    return pl.pallas_call(
        kernel,
        out_shape=(jax.ShapeDtypeStruct((token_num_pad, D), jnp.float32),
                   jax.ShapeDtypeStruct((token_num_pad, D), jnp.float32)),
        grid_spec=grid_spec,
        compiler_params=pltpu.CompilerParams(**cp),
    )(idxs_flat, masks_flat, pooled, uniforms)


# ----------------------------------------------------------------------------
# End2End.encode(...) + bert_dropout, assembled from the kernels above.
# `before_pooling` plays the role of the stacked per-chunk BERT hidden states
# (after stripping CLS/SEP and applying left/right zero-pads).
# ----------------------------------------------------------------------------
def end2end_encode(before_pooling, token_ratio, token_lens, *,
                   dropout_rate=0.1, is_training=True, rng_key=None,
                   tile_n=512, tile_t=256):
    C, N, D = before_pooling.shape

    idxs_l, masks_l, token_num, token_len = token_lens_to_idxs([token_lens])
    idxs = jnp.asarray(idxs_l[0], dtype=jnp.int32)
    masks = jnp.asarray(masks_l[0], dtype=jnp.float32)
    # Fold the per-subtoken token_ratio into the gather masks (exact rewrite of
    # (sum_c chunks) * ratio gathered * mask  ==  (sum_c chunks) gathered * (mask*ratio[idx]))
    masks = masks * token_ratio.astype(jnp.float32)[idxs]

    # kernel 1: chunk sum -> pooled [N_pad, D]
    pooled = chunk_sum(before_pooling, tile_n=tile_n)

    # pad the token axis to a multiple of the token tile (>= 8 rows)
    t_pad8 = _round_up(token_num, 8)
    tt = min(tile_t, t_pad8)
    t_pad = _round_up(token_num, tt)
    pad_slots = (t_pad - token_num) * token_len
    if pad_slots:
        idxs = jnp.pad(idxs, (0, pad_slots))
        masks = jnp.pad(masks, (0, pad_slots))

    apply_dropout = bool(is_training) and dropout_rate > 0.0
    if apply_dropout:
        if rng_key is None:
            rng_key = jax.random.PRNGKey(0)
        uniforms = jax.random.uniform(rng_key, (t_pad, D), dtype=jnp.float32)
    else:
        uniforms = jnp.zeros((t_pad, D), dtype=jnp.float32)

    # kernel 2 (fused): gather + mask-sum + dropout -> (seq_out, seq_out_dropped)
    seq_out_p, seq_drop_p = fused_gather_dropout(
        pooled, idxs, masks, uniforms, t_pad, token_len,
        rate=dropout_rate, apply_dropout=apply_dropout, tile_t=tt)

    return seq_out_p[:token_num], seq_drop_p[:token_num]


if __name__ == "__main__":
    key = jax.random.PRNGKey(0)
    C, D = 3, 128                          # num chunks, bert_dim (config.hidden_size)
    token_lens = [1, 2, 1, 3, 1, 1, 2, 1]  # wordpieces per token
    N = sum(token_lens)                    # subtokens in the doc
    dropout_rate = 0.25

    k1, k2, k3 = jax.random.split(key, 3)
    # synthetic stand-in for the stacked per-chunk BERT outputs
    before_pooling = jax.random.normal(k1, (C, N, D), dtype=jnp.float32)
    token_ratio = jax.random.uniform(k2, (N,), minval=0.2, maxval=1.0,
                                     dtype=jnp.float32)

    seq_out, seq_out_dropped = end2end_encode(
        before_pooling, token_ratio, token_lens,
        dropout_rate=dropout_rate, is_training=True, rng_key=k3)
    seq_out = jax.block_until_ready(seq_out)
    seq_out_dropped = jax.block_until_ready(seq_out_dropped)

    # plain-JAX reference of the deterministic encode_a_doc('average') path
    idxs_l, masks_l, token_num, token_len = token_lens_to_idxs([token_lens])
    ref_pooled = before_pooling.sum(0) * token_ratio[:, None]
    ref_gather = ref_pooled[jnp.asarray(idxs_l[0], dtype=jnp.int32)] \
        * jnp.asarray(masks_l[0], dtype=jnp.float32)[:, None]
    ref = ref_gather.reshape(token_num, token_len, D).sum(1)

    assert seq_out.shape == (token_num, D)
    assert jnp.allclose(seq_out, ref, atol=1e-4, rtol=1e-4), "seq_out mismatch"

    # dropout check: every element is either 0 or seq_out / (1 - rate)
    scale = 1.0 / (1.0 - dropout_rate)
    recon = jnp.where(seq_out_dropped == 0.0, 0.0, seq_out_dropped / scale)
    base = jnp.where(seq_out_dropped == 0.0, 0.0, seq_out)
    assert jnp.allclose(recon, base, atol=1e-4, rtol=1e-4), "dropout mismatch"
    assert bool(jnp.all(jnp.isfinite(seq_out_dropped)))

    print("KERNEL_OK")
</pallas_src>

<mosaic_0001>
module attributes {stable_mosaic.version = 11 : i64} {
  func.func @_chunk_sum_kernel(%arg0: i32, %arg1: i32, %arg2: memref<1x16x128xf32, #tpu.memory_space<vmem>>, %arg3: memref<16x128xf32, #tpu.memory_space<vmem>>) attributes {dimension_semantics = [#tpu.dimension_semantics<parallel>, #tpu.dimension_semantics<arbitrary>], iteration_bounds = array<i64: 1, 3>, scalar_prefetch = 0 : i64, scratch_operands = 0 : i64, tpu.core_type = #tpu.core_type<tc>, window_params = [{transform_indices = @transform_0, window_bounds = array<i64: 1, 16, 128>}, {transform_indices = @transform_1, window_bounds = array<i64: 16, 128>}]} {
    %c0_i32 = arith.constant 0 : i32
    %0 = arith.cmpi eq, %arg1, %c0_i32 : i32
    %1 = arith.extui %0 : i1 to i32
    %c0_i32_0 = arith.constant 0 : i32
    %2 = arith.cmpi ne, %1, %c0_i32_0 : i32
    scf.if %2 {
      %cst = arith.constant 0.000000e+00 : f32
      %8 = vector.broadcast %cst : f32 to vector<16x128xf32>
      %c0_7 = arith.constant 0 : index
      %c0_8 = arith.constant 0 : index
      %9 = vector.load %arg3[%c0_7, %c0_8] : memref<16x128xf32, #tpu.memory_space<vmem>>, vector<16x128xf32>
      tpu.vector_store %arg3[%c0_7, %c0_8], %8 {strides = array<i32>} : memref<16x128xf32, #tpu.memory_space<vmem>>, vector<16x128xf32>,
    } else {
    }
    %c0 = arith.constant 0 : index
    %c0_1 = arith.constant 0 : index
    %3 = vector.load %arg3[%c0, %c0_1] : memref<16x128xf32, #tpu.memory_space<vmem>>, vector<16x128xf32>
    %c0_2 = arith.constant 0 : index
    %c0_3 = arith.constant 0 : index
    %c0_4 = arith.constant 0 : index
    %4 = vector.load %arg2[%c0_2, %c0_3, %c0_4] : memref<1x16x128xf32, #tpu.memory_space<vmem>>, vector<1x16x128xf32>
    %5 = vector.shape_cast %4 : vector<1x16x128xf32> to vector<16x128xf32>
    %6 = arith.addf %3, %5 : vector<16x128xf32>
    %c0_5 = arith.constant 0 : index
    %c0_6 = arith.constant 0 : index
    %7 = vector.load %arg3[%c0_5, %c0_6] : memref<16x128xf32, #tpu.memory_space<vmem>>, vector<16x128xf32>
    tpu.vector_store %arg3[%c0_5, %c0_6], %6 {strides = array<i32>} : memref<16x128xf32, #tpu.memory_space<vmem>>, vector<16x128xf32>,
    return
  }
  func.func @transform_0(%arg0: i32, %arg1: i32) -> (i32, i32, i32) {
    %c0_i32 = arith.constant 0 : i32
    %c0_i32_0 = arith.constant 0 : i32
    return %arg1, %arg0, %c0_i32 : i32, i32, i32
  }
  func.func @transform_1(%arg0: i32, %arg1: i32) -> (i32, i32) {
    %c0_i32 = arith.constant 0 : i32
    %c0_i32_0 = arith.constant 0 : i32
    return %arg0, %c0_i32 : i32, i32
  }
}

</mosaic_0001>

<llo_original>
// kernel: tpu_custom_call.1
$region0: #{tpu_custom_call.1}
  #allocation0 [shape = 'u32[]', space=smem, size = 0x4, offset = 0x4, fixed_abs, tag = 'smem constant byte address 0x4 - core index']
  #allocation1 [shape = 'u32[72,128]{1,0:T(1,128)}', space=vmem, size = 0x9000, scoped, tag = 'internal scratch']
  %s0 = inlined_call_operand.hbm [shape: f32[3,16,128], index: 0, kind: input, shape index: {}]
  %s1 = inlined_call_operand.hbm [shape: f32[16,128], index: 1, kind: output, shape index: {}]
  %s2 = sld [smem:[#allocation0]]
  $region45: #{tpu_custom_call.1} parent=0
    _
  %s4 = ssub.s32 1, %s2
  %s5 = scalar_select 0, %s4, %s2
  $region1: #{tpu_custom_call.1} parent=0
    #allocation2 [shape = 'u8[16384]{0}', space=vmem, size = 0x4000, scoped, tag = 'input window, operand 0']
    #allocation3 [shape = 's32[2]{0}', space=sflag, size = 0x8, scoped, tag = 'scoped memory for tpu_custom_call.1']
    #allocation4 [shape = 's32[2]{0}', space=sflag, size = 0x8, scoped, tag = 'scoped memory for tpu_custom_call.1']
    #allocation5 [shape = 'u8[8192]{0}', space=vmem, size = 0x2000, scoped, tag = 'output window, operand 0, single buffered']
    %6 = vsyncpa [#allocation3], 0
    %s7 = scalar_lea.sflag [#allocation3], 1
    %8 = vsyncpa %s7, 0
    %9 = vsyncpa [#allocation4], 0
    loop: start=0, step=1, limit=5
    $region2: #{tpu_custom_call.1} parent=1 // loop_pre_header
      _
    $region3: #{tpu_custom_call.1} parent=1 // loop_header
      %s11 = sphi 0, %s15
      %p12 = scmp.ge.s32.totalorder %s11, 5
      %s18 = sphi 0, %s30
      %s19 = sphi 0, %s26
      %s20 = sphi 0, %s18
      %s21 = sphi 0, %s19
      %s22 = sphi 0, %s20
      %s23 = sphi 0, %s21
      %s35 = sphi 0, %s37
      %s38 = sphi 0, %s35
      %s39 = sphi 0, %s38
      %s55 = sphi 0, %s39
      %s61 = sphi 0, %s63
      %s64 = sphi 0, %s61
      %s65 = sphi 0, %s64
      %s81 = sphi 0, %s65
    $region4: #{tpu_custom_call.1} parent=1 // loop_header_branch
      %14 = sbr.rel (%p12) target = $region8
    $region5: #{tpu_custom_call.1} parent=1 // loop_body
      %s16 = ssub.s32 %s11, 1
      %s17 = ssub.s32 %s11, 2
      %s24 = sadd.s32 1, %s19
      %p25 = scmp.ge.s32.totalorder %s24, 3
      %s26 = scalar_select %p25, 0, %s24
      %s27 = sadd.s32 1, %s18
      %s28 = scalar_select %p25, %s27, %s18
      %p29 = scmp.ge.s32.totalorder %s28, 1
      %s30 = scalar_select %p29, 0, %s28
      %s31 = ssub.s32 %s19, %s26
      %s32 = ssub.s32 %s18, %s30
      %s33 = sor.u32 %s31, %s32
      %p34 = scmp.eq.s32.totalorder %s33, 0
      %s36 = sadd.s32 %s35, 1
      %s37 = scalar_select %p34, %s35, %s36
      %p40 = pneg %p34
      %p41 = scmp.eq.s32.totalorder %s11, 2
      %p42 = por %p40, %p41
      %p43 = scmp.ne.s32.totalorder %s35, %s38
      %p44 = scmp.eq.s32.totalorder %s11, 0
      %p45 = por %p43, %p44
      %p46 = scmp.ne.s32.totalorder %s35, %s38
      %p47 = scmp.eq.s32.totalorder %s16, 2
      %p48 = por %p46, %p47
      %p49 = scmp.ne.s32.totalorder %s38, %s39
      %p50 = scmp.eq.s32.totalorder %s16, 0
      %p51 = por %p49, %p50
      %p52 = scmp.ne.s32.totalorder %s38, %s39
      %p53 = scmp.eq.s32.totalorder %s17, 2
      %p54 = por %p52, %p53
      %p56 = scmp.ne.s32.totalorder %s39, %s55
      %p57 = scmp.eq.s32.totalorder %s17, 0
      %p58 = por %p56, %p57
      %s59 = ssub.s32 %s18, %s30
      %p60 = scmp.eq.s32.totalorder %s59, 0
      %s62 = sadd.s32 %s61, 1
      %s63 = scalar_select %p60, %s61, %s62
      %p66 = pneg %p60
      %p67 = scmp.eq.s32.totalorder %s11, 2
      %p68 = por %p66, %p67
      %p69 = scmp.ne.s32.totalorder %s61, %s64
      %p70 = scmp.eq.s32.totalorder %s11, 0
      %p71 = por %p69, %p70
      %p72 = scmp.ne.s32.totalorder %s61, %s64
      %p73 = scmp.eq.s32.totalorder %s16, 2
      %p74 = por %p72, %p73
      %p75 = scmp.ne.s32.totalorder %s64, %s65
      %p76 = scmp.eq.s32.totalorder %s16, 0
      %p77 = por %p75, %p76
      %p78 = scmp.ne.s32.totalorder %s64, %s65
      %p79 = scmp.eq.s32.totalorder %s17, 2
      %p80 = por %p78, %p79
      %p82 = scmp.ne.s32.totalorder %s65, %s81
      %p83 = scmp.eq.s32.totalorder %s17, 0
      %p84 = por %p82, %p83
      %p85 = scmp.le.s32.totalorder 1, %s11
      %p86 = scmp.lt.s32.totalorder %s11, 4
      %p87 = pnand %p85, %p86
      %p88 = pneg %p87
      // Predicated region
      $region9: #{tpu_custom_call.1} parent=5 // pred_check
        _
      $region10: #{tpu_custom_call.1} parent=5 // pred_check_branch
        %90 = sbr.rel (%p87) target = $region12
      $region11: #{tpu_custom_call.1} parent=5 // pred_region
        %s91 = ssub.s32 %s11, 1
      $region12: #{tpu_custom_call.1} parent=5 // pred_fallthru
        _
      %p92 = scmp.lt.s32.totalorder %s11, 3
      // Predicated region
      $region13: #{tpu_custom_call.1} parent=5 // pred_check
        %p93 = pneg %p92
      $region14: #{tpu_custom_call.1} parent=5 // pred_check_branch
        %95 = sbr.rel (%p93) target = $region16
      $region15: #{tpu_custom_call.1} parent=5 // pred_region
        // Predicated region
        $region17: #{tpu_custom_call.1} parent=15 // pred_check
          %p96 = pneg %p45
        $region18: #{tpu_custom_call.1} parent=15 // pred_check_branch
          %98 = sbr.rel (%p96) target = $region20
        $region19: #{tpu_custom_call.1} parent=15 // pred_region
          %s99 = sand.u32 %s35, 1
          %s100 = scalar_lea.sflag [#allocation3], %s99
          %s101 = sand.u32 %s35, 1
          %s102 = smul.addr %s101, 16
          %s103 = scalar_lea.vmem [#allocation2], %s102
          %s104 = smul.u32 2, %s18
          %106 = vsyncadd %s100, 0
          %s107 = smul.addr %s19, 2
          %s108 = sadd.s32 %s104, %s107
          %s109 = smul.addr %s108, 8
          %s110 = scalar_lea.hbm %s0, %s109
          %s111 = sshll.u32 %s110, 4
          %s112 = int_to_ptr.hbm [resolvable:$true] %s111
          %s113 = sshll.u32 %s103, 4
          %s114 = int_to_ptr.vmem [resolvable:$true] %s113
          %119 = dma.hbm_to_vmem [thread:$0]  %s112, 256, %s114, %s100, 128, 128, 8
        $region20: #{tpu_custom_call.1} parent=15 // pred_fallthru
          _
      $region16: #{tpu_custom_call.1} parent=5 // pred_fallthru
        _
      %p120 = scmp.le.s32.totalorder 1, %s11
      %p121 = scmp.lt.s32.totalorder %s11, 4
      %p122 = pnand %p120, %p121
      %p123 = pneg %p122
      // Predicated region
      $region21: #{tpu_custom_call.1} parent=5 // pred_check
        _
      $region22: #{tpu_custom_call.1} parent=5 // pred_check_branch
        %125 = sbr.rel (%p122) target = $region24
      $region23: #{tpu_custom_call.1} parent=5 // pred_region
        %s126 = ssub.s32 %s11, 1
        %s127 = sand.u32 %s38, 1
        %s128 = scalar_lea.sflag [#allocation3], %s127
        %s129 = sand.u32 %s38, 1
        %s130 = smul.addr %s129, 16
        %s131 = scalar_lea.vmem [#allocation2], %s130
        // Predicated region
        $region25: #{tpu_custom_call.1} parent=23 // pred_check
          %p132 = pneg %p51
        $region26: #{tpu_custom_call.1} parent=23 // pred_check_branch
          %134 = sbr.rel (%p132) target = $region28
        $region27: #{tpu_custom_call.1} parent=23 // pred_region
          %136 = dma.done %s128, 256
        $region28: #{tpu_custom_call.1} parent=23 // pred_fallthru
          _
        %s137 = sand.u32 %s38, 1
        %s138 = scalar_lea.sflag [#allocation3], %s137
        %s139 = sand.u32 %s38, 1
        %s140 = smul.addr %s139, 16
        %s141 = scalar_lea.vmem [#allocation2], %s140
        %p142 = pneg %p51
        %p143 = pneg %p48
        %p144 = pneg %p77
        %p145 = pneg %p74
        %s146 = smul.u32 2, %s20
        %s147 = smul.u32 2, %s20
        %p148 = scmp.eq.s32.totalorder %s21, 0
        // Predicated region
        $region29: #{tpu_custom_call.1} parent=23 // pred_check
          %p149 = pneg %p148
        $region30: #{tpu_custom_call.1} parent=23 // pred_check_branch
          %151 = sbr.rel (%p149) target = $region32
        $region31: #{tpu_custom_call.1} parent=23 // pred_region
          %152 = vst [vmem:[#allocation5] sm:$0xff] 0.0
          %153 = vst [vmem:[#allocation5 + $0x8] sm:$0xff] 0.0
        $region32: #{tpu_custom_call.1} parent=23 // pred_fallthru
          _
        %v154 = vld [vmem:[#allocation5] sm:$0xff]
        %v155 = vld [vmem:[#allocation5 + $0x8] sm:$0xff]
        %v156 = vld [vmem:[%s131] sm:$0xff]
        %v157 = vld [vmem:[%s131 + $0x8] sm:$0xff]
        %v158 = vadd.f32 %v154, %v156
        %v159 = vadd.f32 %v155, %v157
        %160 = vst [vmem:[#allocation5] sm:$0xff] %v158
        %161 = vst [vmem:[#allocation5 + $0x8] sm:$0xff] %v159
        // Predicated region
        $region33: #{tpu_custom_call.1} parent=23 // pred_check
          %p162 = pneg %p74
        $region34: #{tpu_custom_call.1} parent=23 // pred_check_branch
          %164 = sbr.rel (%p162) target = $region36
        $region35: #{tpu_custom_call.1} parent=23 // pred_region
          %s165 = smul.u32 2, %s20
          %167 = vsyncadd [#allocation4], 0
          %s168 = smul.addr %s165, 8
          %s169 = scalar_lea.hbm %s1, %s168
          %s170 = sshll.u32 [#allocation5], 4
          %s171 = int_to_ptr.vmem [resolvable:$true] %s170
          %s172 = sshll.u32 %s169, 4
          %s173 = int_to_ptr.hbm [resolvable:$true] %s172
          %178 = dma.vmem_to_hbm [thread:$0]  %s171, 256, %s173, [#allocation4], 128, 128, 8
        $region36: #{tpu_custom_call.1} parent=23 // pred_fallthru
          _
        // Predicated region
        $region37: #{tpu_custom_call.1} parent=23 // pred_check
          %p179 = pneg %p74
        $region38: #{tpu_custom_call.1} parent=23 // pred_check_branch
          %181 = sbr.rel (%p179) target = $region40
        $region39: #{tpu_custom_call.1} parent=23 // pred_region
          %183 = dma.done [#allocation4], 256
        $region40: #{tpu_custom_call.1} parent=23 // pred_fallthru
          _
      $region24: #{tpu_custom_call.1} parent=5 // pred_fallthru
        _
      %p184 = scmp.le.s32.totalorder 2, %s11
      // Predicated region
      $region41: #{tpu_custom_call.1} parent=5 // pred_check
        %p185 = pneg %p184
      $region42: #{tpu_custom_call.1} parent=5 // pred_check_branch
        %187 = sbr.rel (%p185) target = $region44
      $region43: #{tpu_custom_call.1} parent=5 // pred_region
        %s188 = ssub.s32 %s11, 2
      $region44: #{tpu_custom_call.1} parent=5 // pred_fallthru
        _
    $region6: #{tpu_custom_call.1} parent=1 // loop_footer
      %s15 = sadd.s32 1, %s11
    $region7: #{tpu_custom_call.1} parent=1 // loop_footer_branch
      %10 = sbr.rel target = $region3
    $region8: #{tpu_custom_call.1} parent=1 // loop_exit
      _
    %189 = vsyncpa [#allocation3], 1
    %s190 = scalar_lea.sflag [#allocation3], 1
    %191 = vsyncpa %s190, 1
    %192 = vsyncpa [#allocation4], 1
    %s193 = scalar_lea.sflag [#allocation4], 1
    %194 = vsyncpa %s193, 1

</llo_original>
